<compile_context>
chip_gen: v5e
topology: v5e:2x2
jax: 0.10.0
libtpu: 0.0.40
codegen_flags: <defaults>
</compile_context>

<pallas_src>
import jax
import jax.numpy as jnp
from jax.experimental import pallas as pl
from jax.experimental.pallas import tpu as pltpu


# ----------------------------- Pallas kernel --------------------------------
def _discriminator_kernel(x_ref, w1_ref, b1_ref, w2_ref, b2_ref, o_ref):
    # fc1 on the MXU: f32 in, f32 accumulation (memory-bound kernel, so f32 is free).
    h = jnp.dot(x_ref[...], w1_ref[...], preferred_element_type=jnp.float32)
    h = jnp.maximum(h + b1_ref[...], 0.0)                        # [TB, H] f32

    # fc2 (out_features == 1): VPU multiply + XLU lane reduction; build a lane-dense
    # [TB//128, 128] result so the output store is full-lane (no vst.msk) and the HBM
    # write is one dense slab. The reshape only splits the major dim (128 rows = 16 full
    # sublane groups), so it is a view-like regrouping, not a lane/sublane relayout.
    rows, lanes = o_ref.shape                                    # (TB//128, 128)
    h3 = h.reshape(rows, lanes, h.shape[-1])                     # major-dim split only
    w2 = w2_ref[...].reshape(1, 1, -1)                           # [1, 1, H]
    z = jnp.sum(h3 * w2, axis=-1) + b2_ref[0, 0]                 # [TB//128, 128]

    # numerically stable sigmoid (never overflows); exact divide so out in (0, 1).
    e = jnp.exp(-jnp.abs(z))
    num = jnp.where(z >= 0.0, 1.0, e)
    o_ref[...] = (num / (1.0 + e)).astype(o_ref.dtype)


def _cdiv(a, b):
    return -(-a // b)


def _choose_batch_tile(B, block_b):
    """Pick (TB rows per tile, grid steps). No host-side padding of x is ever done."""
    out_rows = _cdiv(B, 128)                       # lane-dense output rows
    cap = max(1024, (block_b // 1024) * 1024)      # TB cap, multiple of 1024

    if out_rows * 128 <= cap:
        # Single (possibly partial) tile: output block == full output array, so the
        # (8,128) block-shape constraint is satisfied via the "equals full dim" rule.
        return out_rows * 128, 1

    TB = cap
    grid_n = _cdiv(B, TB)
    if grid_n % 2:
        # v7x megacore: prefer an even batch grid so both TensorCores get equal work.
        # Costs nothing on v5e/v6e beyond one extra ~0.35us grid step.
        for cand in range(cap - 1024, 0, -1024):
            g = _cdiv(B, cand)
            if g % 2 == 0:
                TB, grid_n = cand, g
                break
    return TB, grid_n


def discriminator_forward(x, w1_t, b1, w2_row, b2, *, block_b=8192):
    """x: [B, D] f32; w1_t: [D, H]; b1: [1, H]; w2_row: [1, H]; b2: [1, 1] -> [B, 1] f32."""
    B, D = x.shape
    H = w1_t.shape[1]

    TB, grid_n = _choose_batch_tile(B, block_b)
    out_rows = _cdiv(B, 128)

    cost = pl.CostEstimate(
        flops=2 * B * D * H + 4 * B * H,
        transcendentals=2 * B,                                   # exp + reciprocal per row
        bytes_accessed=B * D * 4 + D * H * 4 + (2 * H + 1) * 4 + out_rows * 128 * 4,
    )

    # NOTE: if profiling on v6e still shows exposed DMA at step boundaries with many
    # tiles, add `pipeline_mode=pl.Buffered(3)` to the x BlockSpec below.
    out = pl.pallas_call(
        _discriminator_kernel,
        out_shape=jax.ShapeDtypeStruct((out_rows, 128), jnp.float32),
        grid=(grid_n,),
        in_specs=[
            pl.BlockSpec((TB, D), lambda i: (i, 0)),             # x: streamed f32 batch tiles
            pl.BlockSpec((D, H), lambda i: (0, 0)),              # W1: VMEM-resident
            pl.BlockSpec((1, H), lambda i: (0, 0)),              # b1
            pl.BlockSpec((1, H), lambda i: (0, 0)),              # w2 (row vector)
            pl.BlockSpec(memory_space=pltpu.MemorySpace.SMEM),   # b2: scalar in SMEM
        ],
        out_specs=pl.BlockSpec((TB // 128, 128), lambda i: (i, 0)),
        compiler_params=pltpu.CompilerParams(dimension_semantics=("parallel",)),
        cost_estimate=cost,
    )(x, w1_t, b1, w2_row, b2)

    # lane-dense [out_rows, 128] -> [B, 1]; slots >= B were never valid and are dropped.
    return out.reshape(out_rows * 128, 1)[:B]


# ----------------------- parameter setup (plain JAX) ------------------------
def xavier_uniform(key, out_features, in_features):
    # matches nn.init.xavier_uniform_ for a PyTorch Linear weight of shape [out, in]
    bound = jnp.sqrt(6.0 / (in_features + out_features))
    return jax.random.uniform(
        key, (out_features, in_features), dtype=jnp.float32, minval=-bound, maxval=bound
    )


def spectral_normalize(w, key, n_iters=20, eps=1e-12):
    """w: [out, in]. Returns w / sigma_max(w); sigma via power iteration
    (same scheme as torch.nn.utils.spectral_norm, applied once at setup)."""
    out_dim, _ = w.shape
    u = jax.random.normal(key, (out_dim,), dtype=jnp.float32)
    u = u / (jnp.linalg.norm(u) + eps)

    def body(_, u):
        v = w.T @ u
        v = v / (jnp.linalg.norm(v) + eps)
        u = w @ v
        u = u / (jnp.linalg.norm(u) + eps)
        return u

    u = jax.lax.fori_loop(0, n_iters, body, u)
    v = w.T @ u
    v = v / (jnp.linalg.norm(v) + eps)
    sigma = u @ (w @ v)
    return w / sigma


def make_discriminator_params(key, input_dim=128, hidden_dim=64):
    k1, k2, k3, k4 = jax.random.split(key, 4)
    w1 = xavier_uniform(k1, hidden_dim, input_dim)   # [H, D] (PyTorch layout)
    w2 = xavier_uniform(k2, 1, hidden_dim)           # [1, H]
    w1 = spectral_normalize(w1, k3)
    w2 = spectral_normalize(w2, k4)
    b1 = jnp.zeros((1, hidden_dim), dtype=jnp.float32)
    b2 = jnp.zeros((1, 1), dtype=jnp.float32)
    # w1 transposed to [in, out] for x @ W1; w2 kept as a [1, H] row vector.
    return w1.T, b1, w2, b2


def discriminator_reference(x, w1_t, b1, w2_row, b2):
    h = jnp.maximum(x @ w1_t + b1, 0.0)
    return jax.nn.sigmoid(h @ w2_row.T + b2)


# --------------------------------- main --------------------------------------
if __name__ == "__main__":
    key = jax.random.PRNGKey(0)
    k_x, k_x2, k_p = jax.random.split(key, 3)

    input_dim, hidden_dim = 128, 64
    w1_t, b1, w2_row, b2 = make_discriminator_params(k_p, input_dim, hidden_dim)

    # --- small-shape test (single partial 128-row tile, no host padding) ---
    batch = 8
    x = jax.random.normal(k_x, (batch, input_dim), dtype=jnp.float32)
    out = jax.block_until_ready(discriminator_forward(x, w1_t, b1, w2_row, b2))

    assert out.shape == (batch, 1)
    assert bool(jnp.all((out > 0.0) & (out < 1.0)))
    ref = discriminator_reference(x, w1_t, b1, w2_row, b2)
    assert float(jnp.max(jnp.abs(out - ref))) < 5e-3

    # --- multi-tile test (pipelined batch grid + masked partial last tile) ---
    batch2 = 4100
    x2 = jax.random.normal(k_x2, (batch2, input_dim), dtype=jnp.float32)
    out2 = jax.block_until_ready(
        discriminator_forward(x2, w1_t, b1, w2_row, b2, block_b=1024)
    )
    assert out2.shape == (batch2, 1)
    assert bool(jnp.all((out2 > 0.0) & (out2 < 1.0)))
    ref2 = discriminator_reference(x2, w1_t, b1, w2_row, b2)
    assert float(jnp.max(jnp.abs(out2 - ref2))) < 5e-3

    print("KERNEL_OK")
</pallas_src>

<mosaic_0001>
module attributes {stable_mosaic.version = 11 : i64} {
  func.func @_discriminator_kernel(%arg0: i32, %arg1: memref<128x128xf32, #tpu.memory_space<vmem>>, %arg2: memref<128x64xf32, #tpu.memory_space<vmem>>, %arg3: memref<1x64xf32, #tpu.memory_space<vmem>>, %arg4: memref<1x64xf32, #tpu.memory_space<vmem>>, %arg5: memref<1x1xf32, #tpu.memory_space<smem>>, %arg6: memref<1x128xf32, #tpu.memory_space<vmem>>) attributes {dimension_semantics = [#tpu.dimension_semantics<parallel>], iteration_bounds = array<i64: 1>, scalar_prefetch = 0 : i64, scratch_operands = 0 : i64, tpu.core_type = #tpu.core_type<tc>, window_params = [{transform_indices = @transform_0, window_bounds = array<i64: 128, 128>}, {pipeline_mode = #tpu.pipeline_mode<synchronous>, transform_indices = @transform_1, window_bounds = array<i64: 128, 64>}, {pipeline_mode = #tpu.pipeline_mode<synchronous>, transform_indices = @transform_2, window_bounds = array<i64: 1, 64>}, {pipeline_mode = #tpu.pipeline_mode<synchronous>, transform_indices = @transform_3, window_bounds = array<i64: 1, 64>}, {transform_indices = @transform_4, window_bounds = array<i64: 1, 1>}, {transform_indices = @transform_5, window_bounds = array<i64: 1, 128>}]} {
    %c0 = arith.constant 0 : index
    %c0_0 = arith.constant 0 : index
    %0 = vector.load %arg1[%c0, %c0_0] : memref<128x128xf32, #tpu.memory_space<vmem>>, vector<128x128xf32>
    %c0_1 = arith.constant 0 : index
    %c0_2 = arith.constant 0 : index
    %1 = vector.load %arg2[%c0_1, %c0_2] : memref<128x64xf32, #tpu.memory_space<vmem>>, vector<128x64xf32>
    %cst = arith.constant dense<0.000000e+00> : vector<128x64xf32>
    %2 = tpu.matmul %0, %1, %cst {dimension_numbers = #tpu.dot_dimension_numbers<[1], [0], [0], [1], [0, 0, 1, 1], [], []>} : vector<128x128xf32>, vector<128x64xf32>, vector<128x64xf32> -> vector<128x64xf32>
    %c0_3 = arith.constant 0 : index
    %c0_4 = arith.constant 0 : index
    %3 = vector.load %arg3[%c0_3, %c0_4] : memref<1x64xf32, #tpu.memory_space<vmem>>, vector<1x64xf32>
    %4 = vector.broadcast %3 : vector<1x64xf32> to vector<128x64xf32>
    %5 = arith.addf %2, %4 : vector<128x64xf32>
    %cst_5 = arith.constant 0.000000e+00 : f32
    %6 = vector.broadcast %cst_5 : f32 to vector<128x64xf32>
    %7 = arith.maximumf %5, %6 : vector<128x64xf32>
    %8 = vector.shape_cast %7 : vector<128x64xf32> to vector<1x128x64xf32>
    %c0_6 = arith.constant 0 : index
    %c0_7 = arith.constant 0 : index
    %9 = vector.load %arg4[%c0_6, %c0_7] : memref<1x64xf32, #tpu.memory_space<vmem>>, vector<1x64xf32>
    %10 = vector.shape_cast %9 : vector<1x64xf32> to vector<1x1x64xf32>
    %11 = vector.broadcast %10 : vector<1x1x64xf32> to vector<1x128x64xf32>
    %12 = arith.mulf %8, %11 : vector<1x128x64xf32>
    %cst_8 = arith.constant dense<0.000000e+00> : vector<1x128xf32>
    %13 = vector.multi_reduction <add>, %12, %cst_8 [2] : vector<1x128x64xf32> to vector<1x128xf32>
    %c0_9 = arith.constant 0 : index
    %c0_10 = arith.constant 0 : index
    %14 = memref.load %arg5[%c0_9, %c0_10] : memref<1x1xf32, #tpu.memory_space<smem>>
    %15 = vector.broadcast %14 : f32 to vector<1x128xf32>
    %16 = arith.addf %13, %15 : vector<1x128xf32>
    %17 = math.absf %16 : vector<1x128xf32>
    %cst_11 = arith.constant 0.000000e+00 : f32
    %18 = vector.broadcast %cst_11 : f32 to vector<1x128xf32>
    %19 = arith.subf %18, %17 : vector<1x128xf32>
    %20 = math.exp %19 : vector<1x128xf32>
    %cst_12 = arith.constant 0.000000e+00 : f32
    %21 = vector.broadcast %cst_12 : f32 to vector<1x128xf32>
    %22 = arith.cmpf oge, %16, %21 : vector<1x128xf32>
    %cst_13 = arith.constant 1.000000e+00 : f32
    %23 = vector.broadcast %cst_13 : f32 to vector<1x128xf32>
    %24 = arith.select %22, %23, %20 : vector<1x128xi1>, vector<1x128xf32>
    %cst_14 = arith.constant 1.000000e+00 : f32
    %25 = vector.broadcast %cst_14 : f32 to vector<1x128xf32>
    %26 = arith.addf %25, %20 : vector<1x128xf32>
    %27 = arith.divf %24, %26 : vector<1x128xf32>
    %c0_15 = arith.constant 0 : index
    %c0_16 = arith.constant 0 : index
    %28 = vector.load %arg6[%c0_15, %c0_16] : memref<1x128xf32, #tpu.memory_space<vmem>>, vector<1x128xf32>
    tpu.vector_store %arg6[%c0_15, %c0_16], %27 {strides = array<i32>} : memref<1x128xf32, #tpu.memory_space<vmem>>, vector<1x128xf32>,
    return
  }
  func.func @transform_0(%arg0: i32) -> (i32, i32) {
    %c0_i32 = arith.constant 0 : i32
    %c0_i32_0 = arith.constant 0 : i32
    return %arg0, %c0_i32 : i32, i32
  }
  func.func @transform_1(%arg0: i32) -> (i32, i32) {
    %c0_i32 = arith.constant 0 : i32
    %c0_i32_0 = arith.constant 0 : i32
    %c0_i32_1 = arith.constant 0 : i32
    return %c0_i32, %c0_i32_0 : i32, i32
  }
  func.func @transform_2(%arg0: i32) -> (i32, i32) {
    %c0_i32 = arith.constant 0 : i32
    %c0_i32_0 = arith.constant 0 : i32
    %c0_i32_1 = arith.constant 0 : i32
    return %c0_i32, %c0_i32_0 : i32, i32
  }
  func.func @transform_3(%arg0: i32) -> (i32, i32) {
    %c0_i32 = arith.constant 0 : i32
    %c0_i32_0 = arith.constant 0 : i32
    %c0_i32_1 = arith.constant 0 : i32
    return %c0_i32, %c0_i32_0 : i32, i32
  }
  func.func @transform_4(%arg0: i32) -> (i32, i32) {
    %c0_i32 = arith.constant 0 : i32
    %c0_i32_0 = arith.constant 0 : i32
    %c0_i32_1 = arith.constant 0 : i32
    return %c0_i32, %c0_i32_0 : i32, i32
  }
  func.func @transform_5(%arg0: i32) -> (i32, i32) {
    %c0_i32 = arith.constant 0 : i32
    %c0_i32_0 = arith.constant 0 : i32
    return %arg0, %c0_i32 : i32, i32
  }
}

</mosaic_0001>

<llo_original>
// kernel: tpu_custom_call.1
$region0: #{tpu_custom_call.1}
  #allocation0 [shape = 'u32[]', space=smem, size = 0x4, offset = 0x4, fixed_abs, tag = 'smem constant byte address 0x4 - core index']
  #allocation1 [shape = 'u32[72,128]{1,0:T(1,128)}', space=vmem, size = 0x9000, scoped, tag = 'internal scratch']
  #allocation2 [shape = 'f32[1,1]{1,0:T(1,128)S(6)}', space=smem, size = 0x200, scoped, tag = 'scoped memory for tpu_custom_call.1']
  %s0 = inlined_call_operand.vmem [shape: f32[8,128], index: 0, kind: input, shape index: {}]
  %s1 = inlined_call_operand.vmem [shape: f32[128,64], index: 1, kind: input, shape index: {}]
  %s2 = inlined_call_operand.vmem [shape: f32[1,64], index: 2, kind: input, shape index: {}]
  %s3 = inlined_call_operand.vmem [shape: f32[1,64], index: 3, kind: input, shape index: {}]
  %s4 = inlined_call_operand.<no memory space> [shape: f32[1,1], index: 4, kind: input, shape index: {}]
  %s5 = inlined_call_operand.hbm [shape: f32[1,128], index: 5, kind: output, shape index: {}]
  %s6 = sld [smem:[#allocation0]]
  $region30: #{tpu_custom_call.1} parent=0
    _
  %s8 = ssub.s32 1, %s6
  %s9 = scalar_select 0, %s8, %s6
  %10 = sst [smem:[#allocation2]] %s4
  $region1: #{tpu_custom_call.1} parent=0
    #allocation3 [shape = 'u8[512]{0}', space=vmem, size = 0x400, scoped, tag = 'output window, operand 0, single buffered']
    #allocation4 [shape = 's32[1]{0}', space=sflag, size = 0x4, scoped, tag = 'scoped memory for tpu_custom_call.1']
    %11 = vsyncpa [#allocation4], 0
    // Predicated region
    $region2: #{tpu_custom_call.1} parent=1 // pred_check
      _
    $region3: #{tpu_custom_call.1} parent=1 // pred_check_branch
      %13 = sbr.rel (0) target = $region5
    $region4: #{tpu_custom_call.1} parent=1 // pred_region
      _
    $region5: #{tpu_custom_call.1} parent=1 // pred_fallthru
      _
    // Predicated region
    $region6: #{tpu_custom_call.1} parent=1 // pred_check
      _
    $region7: #{tpu_custom_call.1} parent=1 // pred_check_branch
      %15 = sbr.rel (0) target = $region9
    $region8: #{tpu_custom_call.1} parent=1 // pred_region
      _
    $region9: #{tpu_custom_call.1} parent=1 // pred_fallthru
      _
    // Predicated region
    $region10: #{tpu_custom_call.1} parent=1 // pred_check
      _
    $region11: #{tpu_custom_call.1} parent=1 // pred_check_branch
      %17 = sbr.rel (0) target = $region13
    $region12: #{tpu_custom_call.1} parent=1 // pred_region
      _
    $region13: #{tpu_custom_call.1} parent=1 // pred_fallthru
      _
    // Predicated region
    $region14: #{tpu_custom_call.1} parent=1 // pred_check
      _
    $region15: #{tpu_custom_call.1} parent=1 // pred_check_branch
      %19 = sbr.rel (0) target = $region17
    $region16: #{tpu_custom_call.1} parent=1 // pred_region
      _
    $region17: #{tpu_custom_call.1} parent=1 // pred_fallthru
      _
    // Predicated region
    $region18: #{tpu_custom_call.1} parent=1 // pred_check
      _
    $region19: #{tpu_custom_call.1} parent=1 // pred_check_branch
      %21 = sbr.rel (0) target = $region21
    $region20: #{tpu_custom_call.1} parent=1 // pred_region
      _
    $region21: #{tpu_custom_call.1} parent=1 // pred_fallthru
      _
    %v22 = vld [vmem:[%s0] sm:$0xff]
    %v23 = vld [vmem:[%s0 + $0x8] sm:$0xff]
    %v24 = vld [vmem:[%s0 + $0x10] sm:$0xff]
    %v25 = vld [vmem:[%s0 + $0x18] sm:$0xff]
    %v26 = vld [vmem:[%s0 + $0x20] sm:$0xff]
    %v27 = vld [vmem:[%s0 + $0x28] sm:$0xff]
    %v28 = vld [vmem:[%s0 + $0x30] sm:$0xff]
    %v29 = vld [vmem:[%s0 + $0x38] sm:$0xff]
    %v30 = vld [vmem:[%s0 + $0x40] sm:$0xff]
    %v31 = vld [vmem:[%s0 + $0x48] sm:$0xff]
    %v32 = vld [vmem:[%s0 + $0x50] sm:$0xff]
    %v33 = vld [vmem:[%s0 + $0x58] sm:$0xff]
    %v34 = vld [vmem:[%s0 + $0x60] sm:$0xff]
    %v35 = vld [vmem:[%s0 + $0x68] sm:$0xff]
    %v36 = vld [vmem:[%s0 + $0x70] sm:$0xff]
    %v37 = vld [vmem:[%s0 + $0x78] sm:$0xff]
    %v38 = vld [vmem:[%s1] sm:$0xff]
    %v39 = vld [vmem:[%s1 + $0x8] sm:$0xff]
    %v40 = vld [vmem:[%s1 + $0x10] sm:$0xff]
    %v41 = vld [vmem:[%s1 + $0x18] sm:$0xff]
    %v42 = vld [vmem:[%s1 + $0x20] sm:$0xff]
    %v43 = vld [vmem:[%s1 + $0x28] sm:$0xff]
    %v44 = vld [vmem:[%s1 + $0x30] sm:$0xff]
    %v45 = vld [vmem:[%s1 + $0x38] sm:$0xff]
    %v46 = vld [vmem:[%s1 + $0x40] sm:$0xff]
    %v47 = vld [vmem:[%s1 + $0x48] sm:$0xff]
    %v48 = vld [vmem:[%s1 + $0x50] sm:$0xff]
    %v49 = vld [vmem:[%s1 + $0x58] sm:$0xff]
    %v50 = vld [vmem:[%s1 + $0x60] sm:$0xff]
    %v51 = vld [vmem:[%s1 + $0x68] sm:$0xff]
    %v52 = vld [vmem:[%s1 + $0x70] sm:$0xff]
    %v53 = vld [vmem:[%s1 + $0x78] sm:$0xff]
    %v54 = vld [vmem:[%s2] sm:$0x1]
    %v56 = vperm.slane %v54, 0
    %58 = vmatpush.msra.mxu0 %v53
    %59 = vmatpush.msra.mxu0 %v52
    %60 = vmatpush.msra.mxu0 %v51
    %61 = vmatpush.msra.mxu0 %v50
    %62 = vmatpush.msra.mxu0 %v49
    %63 = vmatpush.msra.mxu0 %v48
    %64 = vmatpush.msra.mxu0 %v47
    %65 = vmatpush.msra.mxu0 %v46
    %66 = vmatpush.msra.mxu0 %v45
    %67 = vmatpush.msra.mxu0 %v44
    %68 = vmatpush.msra.mxu0 %v43
    %69 = vmatpush.msra.mxu0 %v42
    %70 = vmatpush.msra.mxu0 %v41
    %71 = vmatpush.msra.mxu0 %v40
    %72 = vmatpush.msra.mxu0 %v39
    %73 = vmatpush.msra.mxu0 %v38
    %74 = vmatmul.f32.gmra.mxu0 %v22
    %v75 = vpop.f32.mrf.mxu0
    %v76 = vadd.f32 %v56, %v75
    %77 = vmatmul.f32.gmra.mxu0 %v23
    %v78 = vpop.f32.mrf.mxu0
    %v79 = vadd.f32 %v56, %v78
    %80 = vmatmul.f32.gmra.mxu0 %v24
    %v81 = vpop.f32.mrf.mxu0
    %v82 = vadd.f32 %v56, %v81
    %83 = vmatmul.f32.gmra.mxu0 %v25
    %v84 = vpop.f32.mrf.mxu0
    %v85 = vadd.f32 %v56, %v84
    %86 = vmatmul.f32.gmra.mxu0 %v26
    %v87 = vpop.f32.mrf.mxu0
    %v88 = vadd.f32 %v56, %v87
    %89 = vmatmul.f32.gmra.mxu0 %v27
    %v90 = vpop.f32.mrf.mxu0
    %v91 = vadd.f32 %v56, %v90
    %92 = vmatmul.f32.gmra.mxu0 %v28
    %v93 = vpop.f32.mrf.mxu0
    %v94 = vadd.f32 %v56, %v93
    %95 = vmatmul.f32.gmra.mxu0 %v29
    %v96 = vpop.f32.mrf.mxu0
    %v97 = vadd.f32 %v56, %v96
    %98 = vmatmul.f32.gmra.mxu0 %v30
    %v99 = vpop.f32.mrf.mxu0
    %v100 = vadd.f32 %v56, %v99
    %101 = vmatmul.f32.gmra.mxu0 %v31
    %v102 = vpop.f32.mrf.mxu0
    %v103 = vadd.f32 %v56, %v102
    %104 = vmatmul.f32.gmra.mxu0 %v32
    %v105 = vpop.f32.mrf.mxu0
    %v106 = vadd.f32 %v56, %v105
    %107 = vmatmul.f32.gmra.mxu0 %v33
    %v108 = vpop.f32.mrf.mxu0
    %v109 = vadd.f32 %v56, %v108
    %110 = vmatmul.f32.gmra.mxu0 %v34
    %v111 = vpop.f32.mrf.mxu0
    %v112 = vadd.f32 %v56, %v111
    %113 = vmatmul.f32.gmra.mxu0 %v35
    %v114 = vpop.f32.mrf.mxu0
    %v115 = vadd.f32 %v56, %v114
    %116 = vmatmul.f32.gmra.mxu0 %v36
    %v117 = vpop.f32.mrf.mxu0
    %v118 = vadd.f32 %v56, %v117
    %119 = vmatmul.f32.gmra.mxu0 %v37
    %v120 = vpop.f32.mrf.mxu0
    %v121 = vadd.f32 %v56, %v120
    %122 = vdwg.mxu0
    %v123 = vmax.f32 %v76, 0.0
    %v124 = vmax.f32 %v79, 0.0
    %v125 = vmax.f32 %v82, 0.0
    %v126 = vmax.f32 %v85, 0.0
    %v127 = vmax.f32 %v88, 0.0
    %v128 = vmax.f32 %v91, 0.0
    %v129 = vmax.f32 %v94, 0.0
    %v130 = vmax.f32 %v97, 0.0
    %v131 = vmax.f32 %v100, 0.0
    %v132 = vmax.f32 %v103, 0.0
    %v133 = vmax.f32 %v106, 0.0
    %v134 = vmax.f32 %v109, 0.0
    %v135 = vmax.f32 %v112, 0.0
    %v136 = vmax.f32 %v115, 0.0
    %v137 = vmax.f32 %v118, 0.0
    %v138 = vmax.f32 %v121, 0.0
    %v139 = vld [vmem:[%s3] sm:$0x1]
    %v141 = vperm.slane %v139, 0
    %v143 = vmul.f32 %v123, %v141
    %v144 = vmul.f32 %v124, %v141
    %v145 = vmul.f32 %v125, %v141
    %v146 = vmul.f32 %v126, %v141
    %v147 = vmul.f32 %v127, %v141
    %v148 = vmul.f32 %v128, %v141
    %v149 = vmul.f32 %v129, %v141
    %v150 = vmul.f32 %v130, %v141
    %v151 = vmul.f32 %v131, %v141
    %v152 = vmul.f32 %v132, %v141
    %v153 = vmul.f32 %v133, %v141
    %v154 = vmul.f32 %v134, %v141
    %v155 = vmul.f32 %v135, %v141
    %v156 = vmul.f32 %v136, %v141
    %v157 = vmul.f32 %v137, %v141
    %v158 = vmul.f32 %v138, %v141
    %vm159 = vcmask 523264
    %v160 = vsel %vm159, %v143, 0.0
    %161 = vadd.xlane.f32.xlu0 %v160
    %v162 = vpop.xlane.xlu0 %161
    %v163 = vsel %vm159, %v144, 0.0
    %164 = vadd.xlane.f32.xlu0 %v163
    %v165 = vpop.xlane.xlu0 %164
    %v166 = vsel %vm159, %v145, 0.0
    %167 = vadd.xlane.f32.xlu0 %v166
    %v168 = vpop.xlane.xlu0 %167
    %v169 = vsel %vm159, %v146, 0.0
    %170 = vadd.xlane.f32.xlu0 %v169
    %v171 = vpop.xlane.xlu0 %170
    %v172 = vsel %vm159, %v147, 0.0
    %173 = vadd.xlane.f32.xlu0 %v172
    %v174 = vpop.xlane.xlu0 %173
    %v175 = vsel %vm159, %v148, 0.0
    %176 = vadd.xlane.f32.xlu0 %v175
    %v177 = vpop.xlane.xlu0 %176
    %v178 = vsel %vm159, %v149, 0.0
    %179 = vadd.xlane.f32.xlu0 %v178
    %v180 = vpop.xlane.xlu0 %179
    %v181 = vsel %vm159, %v150, 0.0
    %182 = vadd.xlane.f32.xlu0 %v181
    %v183 = vpop.xlane.xlu0 %182
    %v184 = vsel %vm159, %v151, 0.0
    %185 = vadd.xlane.f32.xlu0 %v184
    %v186 = vpop.xlane.xlu0 %185
    %v187 = vsel %vm159, %v152, 0.0
    %188 = vadd.xlane.f32.xlu0 %v187
    %v189 = vpop.xlane.xlu0 %188
    %v190 = vsel %vm159, %v153, 0.0
    %191 = vadd.xlane.f32.xlu0 %v190
    %v192 = vpop.xlane.xlu0 %191
    %v193 = vsel %vm159, %v154, 0.0
    %194 = vadd.xlane.f32.xlu0 %v193
    %v195 = vpop.xlane.xlu0 %194
    %v196 = vsel %vm159, %v155, 0.0
    %197 = vadd.xlane.f32.xlu0 %v196
    %v198 = vpop.xlane.xlu0 %197
    %v199 = vsel %vm159, %v156, 0.0
    %200 = vadd.xlane.f32.xlu0 %v199
    %v201 = vpop.xlane.xlu0 %200
    %v202 = vsel %vm159, %v157, 0.0
    %203 = vadd.xlane.f32.xlu0 %v202
    %v204 = vpop.xlane.xlu0 %203
    %v205 = vsel %vm159, %v158, 0.0
    %206 = vadd.xlane.f32.xlu0 %v205
    %v207 = vpop.xlane.xlu0 %206
    %s208 = sld [smem:[#allocation2]]
    %v209 = vstv %s208
    %v210 = vadd.f32 %v162, %v209
    %v211 = vadd.f32 %v165, %v209
    %v212 = vadd.f32 %v168, %v209
    %v213 = vadd.f32 %v171, %v209
    %v214 = vadd.f32 %v174, %v209
    %v215 = vadd.f32 %v177, %v209
    %v216 = vadd.f32 %v180, %v209
    %v217 = vadd.f32 %v183, %v209
    %v218 = vadd.f32 %v186, %v209
    %v219 = vadd.f32 %v189, %v209
    %v220 = vadd.f32 %v192, %v209
    %v221 = vadd.f32 %v195, %v209
    %v222 = vadd.f32 %v198, %v209
    %v223 = vadd.f32 %v201, %v209
    %v224 = vadd.f32 %v204, %v209
    %v225 = vadd.f32 %v207, %v209
    %v226 = vand.u32 2147483647, %v210
    %v227 = vand.u32 2147483647, %v211
    %v228 = vand.u32 2147483647, %v212
    %v229 = vand.u32 2147483647, %v213
    %v230 = vand.u32 2147483647, %v214
    %v231 = vand.u32 2147483647, %v215
    %v232 = vand.u32 2147483647, %v216
    %v233 = vand.u32 2147483647, %v217
    %v234 = vand.u32 2147483647, %v218
    %v235 = vand.u32 2147483647, %v219
    %v236 = vand.u32 2147483647, %v220
    %v237 = vand.u32 2147483647, %v221
    %v238 = vand.u32 2147483647, %v222
    %v239 = vand.u32 2147483647, %v223
    %v240 = vand.u32 2147483647, %v224
    %v241 = vand.u32 2147483647, %v225
    %v242 = vsub.f32 0.0, %v226
    %v243 = vsub.f32 0.0, %v227
    %v244 = vsub.f32 0.0, %v228
    %v245 = vsub.f32 0.0, %v229
    %v246 = vsub.f32 0.0, %v230
    %v247 = vsub.f32 0.0, %v231
    %v248 = vsub.f32 0.0, %v232
    %v249 = vsub.f32 0.0, %v233
    %v250 = vsub.f32 0.0, %v234
    %v251 = vsub.f32 0.0, %v235
    %v252 = vsub.f32 0.0, %v236
    %v253 = vsub.f32 0.0, %v237
    %v254 = vsub.f32 0.0, %v238
    %v255 = vsub.f32 0.0, %v239
    %v256 = vsub.f32 0.0, %v240
    %v257 = vsub.f32 0.0, %v241
    %v258 = vmul.f32 %v242, 1.442695
    %v259 = vpow.pop %v258
    %v260 = vmul.f32 %v243, 1.442695
    %v261 = vpow.pop %v260
    %v262 = vmul.f32 %v244, 1.442695
    %v263 = vpow.pop %v262
    %v264 = vmul.f32 %v245, 1.442695
    %v265 = vpow.pop %v264
    %v266 = vmul.f32 %v246, 1.442695
    %v267 = vpow.pop %v266
    %v268 = vmul.f32 %v247, 1.442695
    %v269 = vpow.pop %v268
    %v270 = vmul.f32 %v248, 1.442695
    %v271 = vpow.pop %v270
    %v272 = vmul.f32 %v249, 1.442695
    %v273 = vpow.pop %v272
    %v274 = vmul.f32 %v250, 1.442695
    %v275 = vpow.pop %v274
    %v276 = vmul.f32 %v251, 1.442695
    %v277 = vpow.pop %v276
    %v278 = vmul.f32 %v252, 1.442695
    %v279 = vpow.pop %v278
    %v280 = vmul.f32 %v253, 1.442695
    %v281 = vpow.pop %v280
    %v282 = vmul.f32 %v254, 1.442695
    %v283 = vpow.pop %v282
    %v284 = vmul.f32 %v255, 1.442695
    %v285 = vpow.pop %v284
    %v286 = vmul.f32 %v256, 1.442695
    %v287 = vpow.pop %v286
    %v288 = vmul.f32 %v257, 1.442695
    %v289 = vpow.pop %v288
    %vm290 = vcmp.ge.f32.partialorder %v210, 0.0
    %vm291 = vcmp.ge.f32.partialorder %v211, 0.0
    %vm292 = vcmp.ge.f32.partialorder %v212, 0.0
    %vm293 = vcmp.ge.f32.partialorder %v213, 0.0
    %vm294 = vcmp.ge.f32.partialorder %v214, 0.0
    %vm295 = vcmp.ge.f32.partialorder %v215, 0.0
    %vm296 = vcmp.ge.f32.partialorder %v216, 0.0
    %vm297 = vcmp.ge.f32.partialorder %v217, 0.0
    %vm298 = vcmp.ge.f32.partialorder %v218, 0.0
    %vm299 = vcmp.ge.f32.partialorder %v219, 0.0
    %vm300 = vcmp.ge.f32.partialorder %v220, 0.0
    %vm301 = vcmp.ge.f32.partialorder %v221, 0.0
    %vm302 = vcmp.ge.f32.partialorder %v222, 0.0
    %vm303 = vcmp.ge.f32.partialorder %v223, 0.0
    %vm304 = vcmp.ge.f32.partialorder %v224, 0.0
    %vm305 = vcmp.ge.f32.partialorder %v225, 0.0
    %v306 = vsel %vm290, 1.0, %v259
    %v307 = vsel %vm291, 1.0, %v261
    %v308 = vsel %vm292, 1.0, %v263
    %v309 = vsel %vm293, 1.0, %v265
    %v310 = vsel %vm294, 1.0, %v267
    %v311 = vsel %vm295, 1.0, %v269
    %v312 = vsel %vm296, 1.0, %v271
    %v313 = vsel %vm297, 1.0, %v273
    %v314 = vsel %vm298, 1.0, %v275
    %v315 = vsel %vm299, 1.0, %v277
    %v316 = vsel %vm300, 1.0, %v279
    %v317 = vsel %vm301, 1.0, %v281
    %v318 = vsel %vm302, 1.0, %v283
    %v319 = vsel %vm303, 1.0, %v285
    %v320 = vsel %vm304, 1.0, %v287
    %v321 = vsel %vm305, 1.0, %v289
    %v322 = vadd.f32 %v259, 1.0
    %v323 = vadd.f32 %v261, 1.0
    %v324 = vadd.f32 %v263, 1.0
    %v325 = vadd.f32 %v265, 1.0
    %v326 = vadd.f32 %v267, 1.0
    %v327 = vadd.f32 %v269, 1.0
    %v328 = vadd.f32 %v271, 1.0
    %v329 = vadd.f32 %v273, 1.0
    %v330 = vadd.f32 %v275, 1.0
    %v331 = vadd.f32 %v277, 1.0
    %v332 = vadd.f32 %v279, 1.0
    %v333 = vadd.f32 %v281, 1.0
    %v334 = vadd.f32 %v283, 1.0
    %v335 = vadd.f32 %v285, 1.0
    %v336 = vadd.f32 %v287, 1.0
    %v337 = vadd.f32 %v289, 1.0
    %v338 = vrcp.pop %v322
    %v339 = vmul.f32 %v322, %v338
    %v340 = vsub.f32 1.0, %v339
    %v341 = vmul.f32 %v338, %v340
    %v342 = vadd.f32 %v338, %v341
    %vm343 = vweird.f32 %v322
    %vm344 = vweird.f32 %v338
    %vm345 = vmor %vm343, %vm344
    %v346 = vsel %vm345, %v338, %v342
    %v347 = vand.u32 2147483647, %v322
    %vm348 = vcmp.eq.f32.partialorder %v347, 8.507059e+37
    %v349 = vand.u32 %v322, 2147483648
    %v350 = vor.u32 1.1754944e-38, %v349
    %v351 = vsel %vm348, %v350, %v346
    %v352 = vmul.f32 %v306, %v351
    %v353 = vrcp.pop %v323
    %v354 = vmul.f32 %v323, %v353
    %v355 = vsub.f32 1.0, %v354
    %v356 = vmul.f32 %v353, %v355
    %v357 = vadd.f32 %v353, %v356
    %vm358 = vweird.f32 %v323
    %vm359 = vweird.f32 %v353
    %vm360 = vmor %vm358, %vm359
    %v361 = vsel %vm360, %v353, %v357
    %v362 = vand.u32 2147483647, %v323
    %vm363 = vcmp.eq.f32.partialorder %v362, 8.507059e+37
    %v364 = vand.u32 %v323, 2147483648
    %v365 = vor.u32 1.1754944e-38, %v364
    %v366 = vsel %vm363, %v365, %v361
    %v367 = vmul.f32 %v307, %v366
    %v368 = vrcp.pop %v324
    %v369 = vmul.f32 %v324, %v368
    %v370 = vsub.f32 1.0, %v369
    %v371 = vmul.f32 %v368, %v370
    %v372 = vadd.f32 %v368, %v371
    %vm373 = vweird.f32 %v324
    %vm374 = vweird.f32 %v368
    %vm375 = vmor %vm373, %vm374
    %v376 = vsel %vm375, %v368, %v372
    %v377 = vand.u32 2147483647, %v324
    %vm378 = vcmp.eq.f32.partialorder %v377, 8.507059e+37
    %v379 = vand.u32 %v324, 2147483648
    %v380 = vor.u32 1.1754944e-38, %v379
    %v381 = vsel %vm378, %v380, %v376
    %v382 = vmul.f32 %v308, %v381
    %v383 = vrcp.pop %v325
    %v384 = vmul.f32 %v325, %v383
    %v385 = vsub.f32 1.0, %v384
    %v386 = vmul.f32 %v383, %v385
    %v387 = vadd.f32 %v383, %v386
    %vm388 = vweird.f32 %v325
    %vm389 = vweird.f32 %v383
    %vm390 = vmor %vm388, %vm389
    %v391 = vsel %vm390, %v383, %v387
    %v392 = vand.u32 2147483647, %v325
    %vm393 = vcmp.eq.f32.partialorder %v392, 8.507059e+37
    %v394 = vand.u32 %v325, 2147483648
    %v395 = vor.u32 1.1754944e-38, %v394
    %v396 = vsel %vm393, %v395, %v391
    %v397 = vmul.f32 %v309, %v396
    %v398 = vrcp.pop %v326
    %v399 = vmul.f32 %v326, %v398
    %v400 = vsub.f32 1.0, %v399
    %v401 = vmul.f32 %v398, %v400
    %v402 = vadd.f32 %v398, %v401
    %vm403 = vweird.f32 %v326
    %vm404 = vweird.f32 %v398
    %vm405 = vmor %vm403, %vm404
    %v406 = vsel %vm405, %v398, %v402
    %v407 = vand.u32 2147483647, %v326
    %vm408 = vcmp.eq.f32.partialorder %v407, 8.507059e+37
    %v409 = vand.u32 %v326, 2147483648
    %v410 = vor.u32 1.1754944e-38, %v409
    %v411 = vsel %vm408, %v410, %v406
    %v412 = vmul.f32 %v310, %v411
    %v413 = vrcp.pop %v327
    %v414 = vmul.f32 %v327, %v413
    %v415 = vsub.f32 1.0, %v414
    %v416 = vmul.f32 %v413, %v415
    %v417 = vadd.f32 %v413, %v416
    %vm418 = vweird.f32 %v327
    %vm419 = vweird.f32 %v413
    %vm420 = vmor %vm418, %vm419
    %v421 = vsel %vm420, %v413, %v417
    %v422 = vand.u32 2147483647, %v327
    %vm423 = vcmp.eq.f32.partialorder %v422, 8.507059e+37
    %v424 = vand.u32 %v327, 2147483648
    %v425 = vor.u32 1.1754944e-38, %v424
    %v426 = vsel %vm423, %v425, %v421
    %v427 = vmul.f32 %v311, %v426
    %v428 = vrcp.pop %v328
    %v429 = vmul.f32 %v328, %v428
    %v430 = vsub.f32 1.0, %v429
    %v431 = vmul.f32 %v428, %v430
    %v432 = vadd.f32 %v428, %v431
    %vm433 = vweird.f32 %v328
    %vm434 = vweird.f32 %v428
    %vm435 = vmor %vm433, %vm434
    %v436 = vsel %vm435, %v428, %v432
    %v437 = vand.u32 2147483647, %v328
    %vm438 = vcmp.eq.f32.partialorder %v437, 8.507059e+37
    %v439 = vand.u32 %v328, 2147483648
    %v440 = vor.u32 1.1754944e-38, %v439
    %v441 = vsel %vm438, %v440, %v436
    %v442 = vmul.f32 %v312, %v441
    %v443 = vrcp.pop %v329
    %v444 = vmul.f32 %v329, %v443
    %v445 = vsub.f32 1.0, %v444
    %v446 = vmul.f32 %v443, %v445
    %v447 = vadd.f32 %v443, %v446
    %vm448 = vweird.f32 %v329
    %vm449 = vweird.f32 %v443
    %vm450 = vmor %vm448, %vm449
    %v451 = vsel %vm450, %v443, %v447
    %v452 = vand.u32 2147483647, %v329
    %vm453 = vcmp.eq.f32.partialorder %v452, 8.507059e+37
    %v454 = vand.u32 %v329, 2147483648
    %v455 = vor.u32 1.1754944e-38, %v454
    %v456 = vsel %vm453, %v455, %v451
    %v457 = vmul.f32 %v313, %v456
    %v458 = vrcp.pop %v330
    %v459 = vmul.f32 %v330, %v458
    %v460 = vsub.f32 1.0, %v459
    %v461 = vmul.f32 %v458, %v460
    %v462 = vadd.f32 %v458, %v461
    %vm463 = vweird.f32 %v330
    %vm464 = vweird.f32 %v458
    %vm465 = vmor %vm463, %vm464
    %v466 = vsel %vm465, %v458, %v462
    %v467 = vand.u32 2147483647, %v330
    %vm468 = vcmp.eq.f32.partialorder %v467, 8.507059e+37
    %v469 = vand.u32 %v330, 2147483648
    %v470 = vor.u32 1.1754944e-38, %v469
    %v471 = vsel %vm468, %v470, %v466
    %v472 = vmul.f32 %v314, %v471
    %v473 = vrcp.pop %v331
    %v474 = vmul.f32 %v331, %v473
    %v475 = vsub.f32 1.0, %v474
    %v476 = vmul.f32 %v473, %v475
    %v477 = vadd.f32 %v473, %v476
    %vm478 = vweird.f32 %v331
    %vm479 = vweird.f32 %v473
    %vm480 = vmor %vm478, %vm479
    %v481 = vsel %vm480, %v473, %v477
    %v482 = vand.u32 2147483647, %v331
    %vm483 = vcmp.eq.f32.partialorder %v482, 8.507059e+37
    %v484 = vand.u32 %v331, 2147483648
    %v485 = vor.u32 1.1754944e-38, %v484
    %v486 = vsel %vm483, %v485, %v481
    %v487 = vmul.f32 %v315, %v486
    %v488 = vrcp.pop %v332
    %v489 = vmul.f32 %v332, %v488
    %v490 = vsub.f32 1.0, %v489
    %v491 = vmul.f32 %v488, %v490
    %v492 = vadd.f32 %v488, %v491
    %vm493 = vweird.f32 %v332
    %vm494 = vweird.f32 %v488
    %vm495 = vmor %vm493, %vm494
    %v496 = vsel %vm495, %v488, %v492
    %v497 = vand.u32 2147483647, %v332
    %vm498 = vcmp.eq.f32.partialorder %v497, 8.507059e+37
    %v499 = vand.u32 %v332, 2147483648
    %v500 = vor.u32 1.1754944e-38, %v499
    %v501 = vsel %vm498, %v500, %v496
    %v502 = vmul.f32 %v316, %v501
    %v503 = vrcp.pop %v333
    %v504 = vmul.f32 %v333, %v503
    %v505 = vsub.f32 1.0, %v504
    %v506 = vmul.f32 %v503, %v505
    %v507 = vadd.f32 %v503, %v506
    %vm508 = vweird.f32 %v333
    %vm509 = vweird.f32 %v503
    %vm510 = vmor %vm508, %vm509
    %v511 = vsel %vm510, %v503, %v507
    %v512 = vand.u32 2147483647, %v333
    %vm513 = vcmp.eq.f32.partialorder %v512, 8.507059e+37
    %v514 = vand.u32 %v333, 2147483648
    %v515 = vor.u32 1.1754944e-38, %v514
    %v516 = vsel %vm513, %v515, %v511
    %v517 = vmul.f32 %v317, %v516
    %v518 = vrcp.pop %v334
    %v519 = vmul.f32 %v334, %v518
    %v520 = vsub.f32 1.0, %v519
    %v521 = vmul.f32 %v518, %v520
    %v522 = vadd.f32 %v518, %v521
    %vm523 = vweird.f32 %v334
    %vm524 = vweird.f32 %v518
    %vm525 = vmor %vm523, %vm524
    %v526 = vsel %vm525, %v518, %v522
    %v527 = vand.u32 2147483647, %v334
    %vm528 = vcmp.eq.f32.partialorder %v527, 8.507059e+37
    %v529 = vand.u32 %v334, 2147483648
    %v530 = vor.u32 1.1754944e-38, %v529
    %v531 = vsel %vm528, %v530, %v526
    %v532 = vmul.f32 %v318, %v531
    %v533 = vrcp.pop %v335
    %v534 = vmul.f32 %v335, %v533
    %v535 = vsub.f32 1.0, %v534
    %v536 = vmul.f32 %v533, %v535
    %v537 = vadd.f32 %v533, %v536
    %vm538 = vweird.f32 %v335
    %vm539 = vweird.f32 %v533
    %vm540 = vmor %vm538, %vm539
    %v541 = vsel %vm540, %v533, %v537
    %v542 = vand.u32 2147483647, %v335
    %vm543 = vcmp.eq.f32.partialorder %v542, 8.507059e+37
    %v544 = vand.u32 %v335, 2147483648
    %v545 = vor.u32 1.1754944e-38, %v544
    %v546 = vsel %vm543, %v545, %v541
    %v547 = vmul.f32 %v319, %v546
    %v548 = vrcp.pop %v336
    %v549 = vmul.f32 %v336, %v548
    %v550 = vsub.f32 1.0, %v549
    %v551 = vmul.f32 %v548, %v550
    %v552 = vadd.f32 %v548, %v551
    %vm553 = vweird.f32 %v336
    %vm554 = vweird.f32 %v548
    %vm555 = vmor %vm553, %vm554
    %v556 = vsel %vm555, %v548, %v552
    %v557 = vand.u32 2147483647, %v336
    %vm558 = vcmp.eq.f32.partialorder %v557, 8.507059e+37
    %v559 = vand.u32 %v336, 2147483648
    %v560 = vor.u32 1.1754944e-38, %v559
    %v561 = vsel %vm558, %v560, %v556
    %v562 = vmul.f32 %v320, %v561
    %v563 = vrcp.pop %v337
    %v564 = vmul.f32 %v337, %v563
    %v565 = vsub.f32 1.0, %v564
    %v566 = vmul.f32 %v563, %v565
    %v567 = vadd.f32 %v563, %v566
    %vm568 = vweird.f32 %v337
    %vm569 = vweird.f32 %v563
    %vm570 = vmor %vm568, %vm569
    %v571 = vsel %vm570, %v563, %v567
    %v572 = vand.u32 2147483647, %v337
    %vm573 = vcmp.eq.f32.partialorder %v572, 8.507059e+37
    %v574 = vand.u32 %v337, 2147483648
    %v575 = vor.u32 1.1754944e-38, %v574
    %v576 = vsel %vm573, %v575, %v571
    %v577 = vmul.f32 %v321, %v576
    %v594 = vlaneseq
    %v595 = vand.u32 %v594, 127
    %v596 = vperm.slane %v352, %v595
    %v597 = vadd.s32 %v595, 4294967288
    %v598 = vperm.slane %v367, %v597
    %vm599 = vcmask 130112
    %v600 = vsel %vm599, %v598, %v596
    %v601 = vadd.s32 %v595, 4294967280
    %v602 = vperm.slane %v382, %v601
    %vm603 = vcmask 195712
    %v604 = vsel %vm603, %v602, %v600
    %v605 = vadd.s32 %v595, 4294967272
    %v606 = vperm.slane %v397, %v605
    %vm607 = vcmask 261312
    %v608 = vsel %vm607, %v606, %v604
    %v609 = vadd.s32 %v595, 4294967264
    %v610 = vperm.slane %v412, %v609
    %vm611 = vcmask 326912
    %v612 = vsel %vm611, %v610, %v608
    %v613 = vadd.s32 %v595, 4294967256
    %v614 = vperm.slane %v427, %v613
    %vm615 = vcmask 392512
    %v616 = vsel %vm615, %v614, %v612
    %v617 = vadd.s32 %v595, 4294967248
    %v618 = vperm.slane %v442, %v617
    %vm619 = vcmask 458112
    %v620 = vsel %vm619, %v618, %v616
    %v621 = vadd.s32 %v595, 4294967240
    %v622 = vperm.slane %v457, %v621
    %vm623 = vcmask 523712
    %v624 = vsel %vm623, %v622, %v620
    %v625 = vadd.s32 %v595, 4294967232
    %v626 = vperm.slane %v472, %v625
    %vm627 = vcmask 589312
    %v628 = vsel %vm627, %v626, %v624
    %v629 = vadd.s32 %v595, 4294967224
    %v630 = vperm.slane %v487, %v629
    %vm631 = vcmask 654912
    %v632 = vsel %vm631, %v630, %v628
    %v633 = vadd.s32 %v595, 4294967216
    %v634 = vperm.slane %v502, %v633
    %vm635 = vcmask 720512
    %v636 = vsel %vm635, %v634, %v632
    %v637 = vadd.s32 %v595, 4294967208
    %v638 = vperm.slane %v517, %v637
    %vm639 = vcmask 786112
    %v640 = vsel %vm639, %v638, %v636
    %v641 = vadd.s32 %v595, 4294967200
    %v642 = vperm.slane %v532, %v641
    %vm643 = vcmask 851712
    %v644 = vsel %vm643, %v642, %v640
    %v645 = vadd.s32 %v595, 4294967192
    %v646 = vperm.slane %v547, %v645
    %vm647 = vcmask 917312
    %v648 = vsel %vm647, %v646, %v644
    %v649 = vadd.s32 %v595, 4294967184
    %v650 = vperm.slane %v562, %v649
    %vm651 = vcmask 982912
    %v652 = vsel %vm651, %v650, %v648
    %v653 = vadd.s32 %v595, 4294967176
    %v654 = vperm.slane %v577, %v653
    %vm655 = vcmask 1048512
    %v656 = vsel %vm655, %v654, %v652
    %658 = vst [vmem:[#allocation3] sm:$0x1] %v656
    // Predicated region
    $region22: #{tpu_custom_call.1} parent=1 // pred_check
      _
    $region23: #{tpu_custom_call.1} parent=1 // pred_check_branch
      %660 = sbr.rel (0) target = $region25
    $region24: #{tpu_custom_call.1} parent=1 // pred_region
      %662 = vsyncadd [#allocation4], 0
      %s664 = sshll.u32 [#allocation3], 4
      %s665 = int_to_ptr.vmem [resolvable:$true] %s664
      %s666 = sshll.u32 %s5, 4
      %s667 = int_to_ptr.hbm [resolvable:$true] %s666
      %669 = dma.vmem_to_hbm [thread:$0]  %s665, 16, %s667, [#allocation4]
    $region25: #{tpu_custom_call.1} parent=1 // pred_fallthru
      _
    // Predicated region
    $region26: #{tpu_custom_call.1} parent=1 // pred_check
      _
    $region27: #{tpu_custom_call.1} parent=1 // pred_check_branch
      %671 = sbr.rel (0) target = $region29
    $region28: #{tpu_custom_call.1} parent=1 // pred_region
      %673 = dma.done [#allocation4], 16
    $region29: #{tpu_custom_call.1} parent=1 // pred_fallthru
      _
    %674 = vsyncpa [#allocation4], 1

</llo_original>
